<compile_context>
chip_gen: v5e
topology: v5e:2x2
jax: 0.10.0
libtpu: 0.0.40
codegen_flags: <defaults>
</compile_context>

<pallas_src>
import functools

import jax
import jax.numpy as jnp
from jax.experimental import pallas as pl
from jax.experimental.pallas import tpu as pltpu

NEG = -1e30  # finite "minus infinity": avoids NaN from (-inf) - (-inf)


def _round_up(x, n):
    return (x + n - 1) // n * n


def _gen_params():
    """Per-generation (VMEM tile budget, vmem_limit_bytes, base matmul row tile)."""
    kind = ""
    try:
        kind = jax.devices()[0].device_kind.lower()
    except Exception:
        pass
    if "v5" in kind:
        budget, limit, base_tn = 90 << 20, 100 << 20, 128   # 128 MiB VMEM, 128-wide MXU
    elif "v6" in kind:
        budget, limit, base_tn = 90 << 20, 100 << 20, 256   # 128 MiB VMEM, 256-wide MXU
    elif "v7" in kind:
        budget, limit, base_tn = 36 << 20, 48 << 20, 512    # 64 MiB VMEM per TC
    else:
        budget, limit, base_tn = 36 << 20, 48 << 20, 256    # conservative default
    try:  # refine against the real per-core VMEM capacity when the query is available
        cap = int(pltpu.get_tpu_info().vmem_capacity_bytes)
        budget = min(budget, max(cap - (24 << 20), 16 << 20))
        limit = min(limit, max(cap - (16 << 20), 24 << 20))
    except Exception:
        pass
    return budget, limit, base_tn


def _balanced_row_tile(n, base_tile_n, row_align):
    """Row tile <= base, multiple of row_align, split so padding waste is small."""
    n_tiles = -(-n // base_tile_n)
    tile_n = _round_up(-(-n // n_tiles), row_align)
    return min(tile_n, _round_up(n, row_align))


def _choose_fused_tiles(n, c, k, x_bytes, w_bytes, budget, base_tile_n, row_align):
    tile_n = _balanced_row_tile(n, base_tile_n, row_align)
    tile_c = min(512, _round_up(c, 128))

    def usage(tn, tc):
        # double-buffered x / W / label / out tiles + f32 logits intermediate + accumulators
        return (2 * (tn * k * x_bytes + tc * k * w_bytes + tn * 8)
                + tn * tc * 4 + 3 * tn * 4)

    while tile_c > 128 and usage(tile_n, tile_c) > budget:
        tile_c = _round_up(tile_c // 2, 128)
    while tile_n > 2 * row_align and usage(tile_n, tile_c) > budget:
        tile_n = _round_up(tile_n // 2, row_align)
    # TODO(synk): for very large K the (tile_n,K)/(tile_c,K) operand tiles can still
    # exceed VMEM; that needs a K-tiled third "arbitrary" grid axis with a
    # (tile_n, tile_c) f32 logits accumulator.
    return tile_n, tile_c


def _choose_logits_tiles(n, c, elem_bytes, budget, row_align):
    # Pure HBM streaming path: big, lane-dense tiles to beat the ~0.35us/step overhead.
    tile_n = _balanced_row_tile(n, 256, row_align)
    tile_c = min(8192, _round_up(c, 128))

    def usage(tn, tc):
        return 2 * (tn * tc * elem_bytes + tn * 8) + 3 * tn * 4

    while tile_c > 128 and usage(tile_n, tile_c) > budget:
        tile_c = _round_up(tile_c // 2, 128)
    while tile_n > 2 * row_align and usage(tile_n, tile_c) > budget:
        tile_n = _round_up(tile_n // 2, row_align)
    return tile_n, tile_c


# ------------------------- shared in-kernel pieces ------------------------- #

def _init_acc(t_acc, m_acc, l_acc):
    t_acc[...] = jnp.zeros_like(t_acc)
    m_acc[...] = jnp.full_like(m_acc, NEG)
    l_acc[...] = jnp.zeros_like(l_acc)


def _online_update(logits, labels_col, col0, t_acc, m_acc, l_acc, *,
                   s, num_classes, mask_tail):
    """One class-tile step: masked target pick + online-max excluded exp-sum."""
    tn, tc = logits.shape
    iota = jax.lax.broadcasted_iota(jnp.int32, (tn, tc), 1)
    # (tn,1) shift is nearly free vs. materializing col = col0 + iota (tn,tc).
    is_target = iota == (labels_col - col0)            # exactly one hit per row over all tiles
    # target logit accumulation (single masked reduction)
    t_acc[...] += jnp.sum(jnp.where(is_target, logits, 0.0), axis=1, keepdims=True)
    # excluded (non-target, in-range) scaled logits; flash-style running max/sum.
    excl_mask = is_target
    if mask_tail:  # only emitted when C is not a multiple of tile_c (compile-time flag)
        excl_mask = excl_mask | (iota >= (num_classes - col0))
    excl = jnp.where(excl_mask, NEG, s * logits)
    m_prev = m_acc[...]
    m_new = jnp.maximum(m_prev, jnp.max(excl, axis=1, keepdims=True))
    l_acc[...] = l_acc[...] * jnp.exp(m_prev - m_new) + jnp.sum(
        jnp.exp(excl - m_new), axis=1, keepdims=True)
    m_acc[...] = m_new


def _finalize(t_acc, m_acc, l_acc, loss_ref, *, s, m):
    numerator = s * (t_acc[...] - m)                   # (TILE_N, 1)
    m_fin, l_fin = m_acc[...], l_acc[...]
    # log(exp(numerator) + sum_excl), computed stably
    big = jnp.maximum(numerator, m_fin)
    denom = jnp.exp(numerator - big) + l_fin * jnp.exp(m_fin - big)
    loss_ref[...] = numerator - (big + jnp.log(denom))  # per-row L_i


# ------------------------------- kernels ----------------------------------- #

def _fused_kernel(x_ref, w_ref, lab_ref, loss_ref, t_acc, m_acc, l_acc,
                  *, s, m, num_classes, tile_c, mask_tail):
    j = pl.program_id(1)

    @pl.when(j == 0)
    def _():
        _init_acc(t_acc, m_acc, l_acc)

    # x: (TILE_N, K) · w: (TILE_C, K) contracted on K -> (TILE_N, TILE_C).
    # Operands arrive already in the MXU dtype (wrapper-side cast); f32 accumulation.
    logits = jax.lax.dot_general(
        x_ref[...], w_ref[...], dimension_numbers=(((1,), (1,)), ((), ())),
        preferred_element_type=jnp.float32)

    _online_update(logits, lab_ref[...], j * tile_c, t_acc, m_acc, l_acc,
                   s=s, num_classes=num_classes, mask_tail=mask_tail)

    @pl.when(j == pl.num_programs(1) - 1)
    def _():
        _finalize(t_acc, m_acc, l_acc, loss_ref, s=s, m=m)


def _logits_kernel(out_ref, lab_ref, loss_ref, t_acc, m_acc, l_acc,
                   *, s, m, num_classes, tile_c, mask_tail):
    j = pl.program_id(1)

    @pl.when(j == 0)
    def _():
        _init_acc(t_acc, m_acc, l_acc)

    _online_update(out_ref[...].astype(jnp.float32), lab_ref[...], j * tile_c,
                   t_acc, m_acc, l_acc, s=s, num_classes=num_classes,
                   mask_tail=mask_tail)

    @pl.when(j == pl.num_programs(1) - 1)
    def _():
        _finalize(t_acc, m_acc, l_acc, loss_ref, s=s, m=m)


# ------------------------------- wrappers ----------------------------------- #

def adm_softmax_loss_fused(x, fc_weight, labels, *, s=10.0, m=0.4,
                           mxu_dtype=jnp.bfloat16):
    """loss(fc(x), labels): fused matmul + AM-softmax loss; logits stay in VMEM.

    fc_weight is in nn.Linear layout (out_features, in_features).
    mxu_dtype=jnp.bfloat16 (default, all generations) streams bf16 operands from
    HBM and accumulates in f32 on the MXU; pass mxu_dtype=None for exact f32.
    """
    n, k = x.shape
    c, k2 = fc_weight.shape
    assert k == k2 and n == labels.shape[0]
    assert c >= 2, "AM-softmax needs >= 2 classes (excluded-class sum degenerates at C==1)"

    budget, vmem_limit, base_tn = _gen_params()

    # Wrapper-side MXU-dtype cast: halves x/W HBM traffic and removes the
    # per-grid-step VPU cast inside the kernel.
    if mxu_dtype is not None:
        x = x.astype(mxu_dtype)
        fc_weight = fc_weight.astype(mxu_dtype)
    x_bytes = jnp.dtype(x.dtype).itemsize
    w_bytes = jnp.dtype(fc_weight.dtype).itemsize
    row_align = 16 if x_bytes < 4 else 8   # bf16 packs 2 rows / sublane

    tile_n, tile_c = _choose_fused_tiles(n, c, k, x_bytes, w_bytes,
                                         budget, base_tn, row_align)
    pn, pc = _round_up(n, tile_n), _round_up(c, tile_c)

    xp = jnp.pad(x, ((0, pn - n), (0, 0)))
    wp = jnp.pad(fc_weight, ((0, pc - c), (0, 0)))
    labp = jnp.pad(labels.astype(jnp.int32), (0, pn - n)).reshape(pn, 1)

    grid = (pn // tile_n, pc // tile_c)
    kernel = functools.partial(_fused_kernel, s=s, m=m, num_classes=c,
                               tile_c=tile_c, mask_tail=(pc != c))
    per_row = pl.pallas_call(
        kernel,
        out_shape=jax.ShapeDtypeStruct((pn, 1), jnp.float32),
        grid_spec=pltpu.PrefetchScalarGridSpec(
            num_scalar_prefetch=0,
            grid=grid,
            in_specs=[
                pl.BlockSpec((tile_n, k), lambda i, j: (i, 0)),
                pl.BlockSpec((tile_c, k), lambda i, j: (j, 0)),
                pl.BlockSpec((tile_n, 1), lambda i, j: (i, 0)),
            ],
            out_specs=pl.BlockSpec((tile_n, 1), lambda i, j: (i, 0)),
            scratch_shapes=[pltpu.VMEM((tile_n, 1), jnp.float32)] * 3,
        ),
        compiler_params=pltpu.CompilerParams(
            dimension_semantics=("parallel", "arbitrary"),
            vmem_limit_bytes=vmem_limit,
        ),
        cost_estimate=pl.CostEstimate(
            flops=2 * pn * k * pc,
            transcendentals=pn * pc,
            bytes_accessed=pn * k * x_bytes + grid[0] * pc * k * w_bytes + 8 * pn,
        ),
    )(xp, wp, labp)
    return -jnp.sum(per_row[:n, 0]) / n


def adm_softmax_loss(x, labels, out, *, s=10.0, m=0.4):
    """Literal AdMSoftmaxLoss.forward(x, labels, out) on precomputed logits `out`."""
    assert x.shape[0] == labels.shape[0] == out.shape[0]
    n, c = out.shape
    assert c >= 2, "AM-softmax needs >= 2 classes"

    budget, vmem_limit, _ = _gen_params()
    elem_bytes = jnp.dtype(out.dtype).itemsize
    row_align = 16 if elem_bytes < 4 else 8
    tile_n, tile_c = _choose_logits_tiles(n, c, elem_bytes, budget, row_align)
    pn, pc = _round_up(n, tile_n), _round_up(c, tile_c)

    outp = jnp.pad(out, ((0, pn - n), (0, pc - c)))
    labp = jnp.pad(labels.astype(jnp.int32), (0, pn - n)).reshape(pn, 1)

    grid = (pn // tile_n, pc // tile_c)
    kernel = functools.partial(_logits_kernel, s=s, m=m, num_classes=c,
                               tile_c=tile_c, mask_tail=(pc != c))
    per_row = pl.pallas_call(
        kernel,
        out_shape=jax.ShapeDtypeStruct((pn, 1), jnp.float32),
        grid_spec=pltpu.PrefetchScalarGridSpec(
            num_scalar_prefetch=0,
            grid=grid,
            in_specs=[
                pl.BlockSpec((tile_n, tile_c), lambda i, j: (i, j)),
                pl.BlockSpec((tile_n, 1), lambda i, j: (i, 0)),
            ],
            out_specs=pl.BlockSpec((tile_n, 1), lambda i, j: (i, 0)),
            scratch_shapes=[pltpu.VMEM((tile_n, 1), jnp.float32)] * 3,
        ),
        compiler_params=pltpu.CompilerParams(
            dimension_semantics=("parallel", "arbitrary"),
            vmem_limit_bytes=vmem_limit,
        ),
        cost_estimate=pl.CostEstimate(
            flops=5 * pn * pc,
            transcendentals=pn * pc,
            bytes_accessed=pn * pc * elem_bytes + 8 * pn,
        ),
    )(outp, labp)
    return -jnp.sum(per_row[:n, 0]) / n


# Pure-JAX reference (exactly the PyTorch formula) for verification.
def adm_softmax_loss_ref(out, labels, *, s=10.0, m=0.4):
    n, c = out.shape
    target = out[jnp.arange(n), labels]
    numerator = s * (target - m)
    onehot = jax.nn.one_hot(labels, c, dtype=jnp.bool_)
    sum_excl = jnp.sum(jnp.where(onehot, 0.0, jnp.exp(s * out)), axis=1)
    denominator = jnp.exp(numerator) + sum_excl
    return -jnp.mean(numerator - jnp.log(denominator))


# --------------------------------- main ------------------------------------ #

if __name__ == "__main__":
    key = jax.random.PRNGKey(0)
    S, M = 10.0, 0.4

    def run_case(key, n, k, c):
        kx, kw, kl = jax.random.split(key, 3)
        x = jax.random.normal(kx, (n, k), dtype=jnp.float32)
        w = (jax.random.uniform(kw, (c, k), dtype=jnp.float32) - 0.5) * 0.2  # nn.Linear (out, in)
        labels = jax.random.randint(kl, (n,), 0, c, dtype=jnp.int32)

        out = jnp.dot(x, w.T, precision=jax.lax.Precision.HIGHEST)
        ref = adm_softmax_loss_ref(out, labels, s=S, m=M)

        # f32 fused path (exact against the f32 reference).
        loss_f32 = jax.block_until_ready(
            adm_softmax_loss_fused(x, w, labels, s=S, m=M, mxu_dtype=None))
        assert jnp.allclose(loss_f32, ref, rtol=2e-3, atol=2e-3), (loss_f32, ref)

        # bf16-operand fused path (default): compare against a bf16-logits reference.
        out_bf = jnp.dot(x.astype(jnp.bfloat16), w.astype(jnp.bfloat16).T,
                         preferred_element_type=jnp.float32)
        ref_bf = adm_softmax_loss_ref(out_bf, labels, s=S, m=M)
        loss_bf = jax.block_until_ready(
            adm_softmax_loss_fused(x, w, labels, s=S, m=M))
        assert jnp.allclose(loss_bf, ref_bf, rtol=2e-2, atol=2e-2), (loss_bf, ref_bf)

        # logits-only path (the literal module.forward on precomputed logits).
        loss_logits = jax.block_until_ready(adm_softmax_loss(x, labels, out, s=S, m=M))
        assert jnp.allclose(loss_logits, ref, rtol=2e-3, atol=2e-3), (loss_logits, ref)

    k1, k2 = jax.random.split(key)
    # Small, unaligned case (exercises class/row padding masks): N=8, K=32, C=16
    run_case(k1, 8, 32, 16)
    # Tile-aligned case exercising multi-tile class reduction + parallel row axis
    run_case(k2, 256, 128, 1024)

    # TODO(synk): the module's host-side label-range asserts (min>=0, max<C) are not
    # replicated in-kernel; out-of-range labels are treated as "no target class".
    print("KERNEL_OK")
</pallas_src>

<mosaic_0001>
module attributes {stable_mosaic.version = 11 : i64} {
  func.func @_fused_kernel(%arg0: i32, %arg1: i32, %arg2: memref<8x32xf32, #tpu.memory_space<vmem>>, %arg3: memref<128x32xf32, #tpu.memory_space<vmem>>, %arg4: memref<8x1xi32, #tpu.memory_space<vmem>>, %arg5: memref<8x1xf32, #tpu.memory_space<vmem>>, %arg6: memref<8x1xf32, #tpu.memory_space<vmem>>, %arg7: memref<8x1xf32, #tpu.memory_space<vmem>>, %arg8: memref<8x1xf32, #tpu.memory_space<vmem>>) attributes {dimension_semantics = [#tpu.dimension_semantics<parallel>, #tpu.dimension_semantics<arbitrary>], iteration_bounds = array<i64: 1, 1>, scalar_prefetch = 0 : i64, scratch_operands = 3 : i64, tpu.core_type = #tpu.core_type<tc>, window_params = [{transform_indices = @transform_0, window_bounds = array<i64: 8, 32>}, {transform_indices = @transform_1, window_bounds = array<i64: 128, 32>}, {transform_indices = @transform_2, window_bounds = array<i64: 8, 1>}, {transform_indices = @transform_3, window_bounds = array<i64: 8, 1>}]} {
    %c0_i32 = arith.constant 0 : i32
    %0 = arith.cmpi eq, %arg1, %c0_i32 : i32
    %1 = arith.extui %0 : i1 to i32
    %c0_i32_0 = arith.constant 0 : i32
    %2 = arith.cmpi ne, %1, %c0_i32_0 : i32
    scf.if %2 {
      %cst_26 = arith.constant 0.000000e+00 : f32
      %47 = vector.broadcast %cst_26 : f32 to vector<8x1xf32>
      %c0_27 = arith.constant 0 : index
      %c0_28 = arith.constant 0 : index
      %48 = vector.load %arg6[%c0_27, %c0_28] : memref<8x1xf32, #tpu.memory_space<vmem>>, vector<8x1xf32>
      tpu.vector_store %arg6[%c0_27, %c0_28], %47 {strides = array<i32>} : memref<8x1xf32, #tpu.memory_space<vmem>>, vector<8x1xf32>,
      %cst_29 = arith.constant -1.000000e+30 : f32
      %49 = vector.broadcast %cst_29 : f32 to vector<8x1xf32>
      %c0_30 = arith.constant 0 : index
      %c0_31 = arith.constant 0 : index
      %50 = vector.load %arg7[%c0_30, %c0_31] : memref<8x1xf32, #tpu.memory_space<vmem>>, vector<8x1xf32>
      tpu.vector_store %arg7[%c0_30, %c0_31], %49 {strides = array<i32>} : memref<8x1xf32, #tpu.memory_space<vmem>>, vector<8x1xf32>,
      %cst_32 = arith.constant 0.000000e+00 : f32
      %51 = vector.broadcast %cst_32 : f32 to vector<8x1xf32>
      %c0_33 = arith.constant 0 : index
      %c0_34 = arith.constant 0 : index
      %52 = vector.load %arg8[%c0_33, %c0_34] : memref<8x1xf32, #tpu.memory_space<vmem>>, vector<8x1xf32>
      tpu.vector_store %arg8[%c0_33, %c0_34], %51 {strides = array<i32>} : memref<8x1xf32, #tpu.memory_space<vmem>>, vector<8x1xf32>,
    } else {
    }
    %c0 = arith.constant 0 : index
    %c0_1 = arith.constant 0 : index
    %3 = vector.load %arg2[%c0, %c0_1] : memref<8x32xf32, #tpu.memory_space<vmem>>, vector<8x32xf32>
    %c0_2 = arith.constant 0 : index
    %c0_3 = arith.constant 0 : index
    %4 = vector.load %arg3[%c0_2, %c0_3] : memref<128x32xf32, #tpu.memory_space<vmem>>, vector<128x32xf32>
    %cst = arith.constant dense<0.000000e+00> : vector<8x128xf32>
    %5 = tpu.matmul %3, %4, %cst {dimension_numbers = #tpu.dot_dimension_numbers<[1], [1], [0], [0], [0, 0, 1, 0], [], []>} : vector<8x32xf32>, vector<128x32xf32>, vector<8x128xf32> -> vector<8x128xf32>
    %c0_4 = arith.constant 0 : index
    %c0_5 = arith.constant 0 : index
    %6 = vector.load %arg4[%c0_4, %c0_5] : memref<8x1xi32, #tpu.memory_space<vmem>>, vector<8x1xi32>
    %c128_i32 = arith.constant 128 : i32
    %7 = arith.muli %arg1, %c128_i32 : i32
    %8 = tpu.iota {dimensions = array<i32: 1>} : vector<8x128xi32>
    %9 = vector.broadcast %7 : i32 to vector<8x1xi32>
    %10 = arith.subi %6, %9 : vector<8x1xi32>
    %11 = vector.broadcast %10 : vector<8x1xi32> to vector<8x128xi32>
    %12 = arith.cmpi eq, %8, %11 : vector<8x128xi32>
    %c0_6 = arith.constant 0 : index
    %c0_7 = arith.constant 0 : index
    %13 = vector.load %arg6[%c0_6, %c0_7] : memref<8x1xf32, #tpu.memory_space<vmem>>, vector<8x1xf32>
    %cst_8 = arith.constant 0.000000e+00 : f32
    %14 = vector.broadcast %cst_8 : f32 to vector<8x128xf32>
    %15 = arith.select %12, %5, %14 : vector<8x128xi1>, vector<8x128xf32>
    %cst_9 = arith.constant dense<0.000000e+00> : vector<8xf32>
    %16 = vector.multi_reduction <add>, %15, %cst_9 [1] : vector<8x128xf32> to vector<8xf32>
    %17 = vector.shape_cast %16 : vector<8xf32> to vector<8x1xf32>
    %18 = arith.addf %13, %17 : vector<8x1xf32>
    %c0_10 = arith.constant 0 : index
    %c0_11 = arith.constant 0 : index
    %19 = vector.load %arg6[%c0_10, %c0_11] : memref<8x1xf32, #tpu.memory_space<vmem>>, vector<8x1xf32>
    tpu.vector_store %arg6[%c0_10, %c0_11], %18 {strides = array<i32>} : memref<8x1xf32, #tpu.memory_space<vmem>>, vector<8x1xf32>,
    %c16_i32 = arith.constant 16 : i32
    %20 = arith.subi %c16_i32, %7 : i32
    %21 = vector.broadcast %20 : i32 to vector<8x128xi32>
    %22 = arith.cmpi sge, %8, %21 : vector<8x128xi32>
    %23 = arith.ori %12, %22 : vector<8x128xi1>
    %cst_12 = arith.constant 1.000000e+01 : f32
    %24 = vector.broadcast %cst_12 : f32 to vector<8x128xf32>
    %25 = arith.mulf %24, %5 : vector<8x128xf32>
    %cst_13 = arith.constant -1.000000e+30 : f32
    %26 = vector.broadcast %cst_13 : f32 to vector<8x128xf32>
    %27 = arith.select %23, %26, %25 : vector<8x128xi1>, vector<8x128xf32>
    %c0_14 = arith.constant 0 : index
    %c0_15 = arith.constant 0 : index
    %28 = vector.load %arg7[%c0_14, %c0_15] : memref<8x1xf32, #tpu.memory_space<vmem>>, vector<8x1xf32>
    %cst_16 = arith.constant dense<0xFF800000> : vector<8xf32>
    %29 = vector.multi_reduction <maximumf>, %27, %cst_16 [1] : vector<8x128xf32> to vector<8xf32>
    %30 = vector.shape_cast %29 : vector<8xf32> to vector<8x1xf32>
    %31 = arith.maximumf %28, %30 : vector<8x1xf32>
    %c0_17 = arith.constant 0 : index
    %c0_18 = arith.constant 0 : index
    %32 = vector.load %arg8[%c0_17, %c0_18] : memref<8x1xf32, #tpu.memory_space<vmem>>, vector<8x1xf32>
    %33 = arith.subf %28, %31 : vector<8x1xf32>
    %34 = math.exp %33 : vector<8x1xf32>
    %35 = arith.mulf %32, %34 : vector<8x1xf32>
    %36 = vector.broadcast %31 : vector<8x1xf32> to vector<8x128xf32>
    %37 = arith.subf %27, %36 : vector<8x128xf32>
    %38 = math.exp %37 : vector<8x128xf32>
    %cst_19 = arith.constant dense<0.000000e+00> : vector<8xf32>
    %39 = vector.multi_reduction <add>, %38, %cst_19 [1] : vector<8x128xf32> to vector<8xf32>
    %40 = vector.shape_cast %39 : vector<8xf32> to vector<8x1xf32>
    %41 = arith.addf %35, %40 : vector<8x1xf32>
    %c0_20 = arith.constant 0 : index
    %c0_21 = arith.constant 0 : index
    %42 = vector.load %arg8[%c0_20, %c0_21] : memref<8x1xf32, #tpu.memory_space<vmem>>, vector<8x1xf32>
    tpu.vector_store %arg8[%c0_20, %c0_21], %41 {strides = array<i32>} : memref<8x1xf32, #tpu.memory_space<vmem>>, vector<8x1xf32>,
    %c0_22 = arith.constant 0 : index
    %c0_23 = arith.constant 0 : index
    %43 = vector.load %arg7[%c0_22, %c0_23] : memref<8x1xf32, #tpu.memory_space<vmem>>, vector<8x1xf32>
    tpu.vector_store %arg7[%c0_22, %c0_23], %31 {strides = array<i32>} : memref<8x1xf32, #tpu.memory_space<vmem>>, vector<8x1xf32>,
    %c0_i32_24 = arith.constant 0 : i32
    %44 = arith.cmpi eq, %arg1, %c0_i32_24 : i32
    %45 = arith.extui %44 : i1 to i32
    %c0_i32_25 = arith.constant 0 : i32
    %46 = arith.cmpi ne, %45, %c0_i32_25 : i32
    scf.if %46 {
      %c0_26 = arith.constant 0 : index
      %c0_27 = arith.constant 0 : index
      %47 = vector.load %arg6[%c0_26, %c0_27] : memref<8x1xf32, #tpu.memory_space<vmem>>, vector<8x1xf32>
      %cst_28 = arith.constant 4.000000e-01 : f32
      %48 = vector.broadcast %cst_28 : f32 to vector<8x1xf32>
      %49 = arith.subf %47, %48 : vector<8x1xf32>
      %cst_29 = arith.constant 1.000000e+01 : f32
      %50 = vector.broadcast %cst_29 : f32 to vector<8x1xf32>
      %51 = arith.mulf %50, %49 : vector<8x1xf32>
      %c0_30 = arith.constant 0 : index
      %c0_31 = arith.constant 0 : index
      %52 = vector.load %arg7[%c0_30, %c0_31] : memref<8x1xf32, #tpu.memory_space<vmem>>, vector<8x1xf32>
      %c0_32 = arith.constant 0 : index
      %c0_33 = arith.constant 0 : index
      %53 = vector.load %arg8[%c0_32, %c0_33] : memref<8x1xf32, #tpu.memory_space<vmem>>, vector<8x1xf32>
      %54 = arith.maximumf %51, %52 : vector<8x1xf32>
      %55 = arith.subf %51, %54 : vector<8x1xf32>
      %56 = math.exp %55 : vector<8x1xf32>
      %57 = arith.subf %52, %54 : vector<8x1xf32>
      %58 = math.exp %57 : vector<8x1xf32>
      %59 = arith.mulf %53, %58 : vector<8x1xf32>
      %60 = arith.addf %56, %59 : vector<8x1xf32>
      %61 = math.log %60 : vector<8x1xf32>
      %62 = arith.addf %54, %61 : vector<8x1xf32>
      %63 = arith.subf %51, %62 : vector<8x1xf32>
      %c0_34 = arith.constant 0 : index
      %c0_35 = arith.constant 0 : index
      %64 = vector.load %arg5[%c0_34, %c0_35] : memref<8x1xf32, #tpu.memory_space<vmem>>, vector<8x1xf32>
      tpu.vector_store %arg5[%c0_34, %c0_35], %63 {strides = array<i32>} : memref<8x1xf32, #tpu.memory_space<vmem>>, vector<8x1xf32>,
    } else {
    }
    return
  }
  func.func @transform_0(%arg0: i32, %arg1: i32) -> (i32, i32) {
    %c0_i32 = arith.constant 0 : i32
    %c0_i32_0 = arith.constant 0 : i32
    return %arg0, %c0_i32 : i32, i32
  }
  func.func @transform_1(%arg0: i32, %arg1: i32) -> (i32, i32) {
    %c0_i32 = arith.constant 0 : i32
    %c0_i32_0 = arith.constant 0 : i32
    return %arg1, %c0_i32 : i32, i32
  }
  func.func @transform_2(%arg0: i32, %arg1: i32) -> (i32, i32) {
    %c0_i32 = arith.constant 0 : i32
    %c0_i32_0 = arith.constant 0 : i32
    return %arg0, %c0_i32 : i32, i32
  }
  func.func @transform_3(%arg0: i32, %arg1: i32) -> (i32, i32) {
    %c0_i32 = arith.constant 0 : i32
    %c0_i32_0 = arith.constant 0 : i32
    return %arg0, %c0_i32 : i32, i32
  }
}

</mosaic_0001>

<llo_original>
// kernel: tpu_custom_call.1
$region0: #{tpu_custom_call.1}
  #allocation0 [shape = 'u32[]', space=smem, size = 0x4, offset = 0x4, fixed_abs, tag = 'smem constant byte address 0x4 - core index']
  #allocation1 [shape = 'u32[72,128]{1,0:T(1,128)}', space=vmem, size = 0x9000, scoped, tag = 'internal scratch']
  #allocation2 [shape = 'f32[8,1]{1,0:T(8,128)}', space=vmem, size = 0x1000, scoped, tag = 'scratch operand']
  #allocation3 [shape = 'f32[8,1]{1,0:T(8,128)}', space=vmem, size = 0x1000, scoped, tag = 'scratch operand']
  #allocation4 [shape = 'f32[8,1]{1,0:T(8,128)}', space=vmem, size = 0x1000, scoped, tag = 'scratch operand']
  %s0 = inlined_call_operand.vmem [shape: f32[8,32], index: 0, kind: input, shape index: {}]
  %s1 = inlined_call_operand.vmem [shape: f32[128,32], index: 1, kind: input, shape index: {}]
  %s2 = inlined_call_operand.vmem [shape: s32[8,1], index: 2, kind: input, shape index: {}]
  %s3 = inlined_call_operand.vmem [shape: f32[8,1], index: 3, kind: output, shape index: {}]
  %s4 = sld [smem:[#allocation0]]
  $region30: #{tpu_custom_call.1} parent=0
    _
  %s6 = ssub.s32 1, %s4
  %s7 = scalar_select 0, %s6, %s4
  // Predicated region
  $region2: #{tpu_custom_call.1} parent=0 // pred_check
    _
  $region3: #{tpu_custom_call.1} parent=0 // pred_check_branch
    %9 = sbr.rel (0) target = $region5
  $region4: #{tpu_custom_call.1} parent=0 // pred_region
    _
  $region5: #{tpu_custom_call.1} parent=0 // pred_fallthru
    _
  // Predicated region
  $region6: #{tpu_custom_call.1} parent=0 // pred_check
    _
  $region7: #{tpu_custom_call.1} parent=0 // pred_check_branch
    %11 = sbr.rel (0) target = $region9
  $region8: #{tpu_custom_call.1} parent=0 // pred_region
    _
  $region9: #{tpu_custom_call.1} parent=0 // pred_fallthru
    _
  // Predicated region
  $region10: #{tpu_custom_call.1} parent=0 // pred_check
    _
  $region11: #{tpu_custom_call.1} parent=0 // pred_check_branch
    %13 = sbr.rel (0) target = $region13
  $region12: #{tpu_custom_call.1} parent=0 // pred_region
    _
  $region13: #{tpu_custom_call.1} parent=0 // pred_fallthru
    _
  %p14 = scmp.eq.s32.totalorder 0, 0
  // Predicated region
  $region14: #{tpu_custom_call.1} parent=0 // pred_check
    %p15 = pneg %p14
  $region15: #{tpu_custom_call.1} parent=0 // pred_check_branch
    %17 = sbr.rel (%p15) target = $region17
  $region16: #{tpu_custom_call.1} parent=0 // pred_region
    %vm18 = vcmask 7168
    %19 = vst.msk [vmem:[#allocation2] sm:$0xff] %vm18, 0.0
    %20 = vst.msk [vmem:[#allocation3] sm:$0xff] %vm18, -1e+30
    %21 = vst.msk [vmem:[#allocation4] sm:$0xff] %vm18, 0.0
  $region17: #{tpu_custom_call.1} parent=0 // pred_fallthru
    _
  %v22 = vld [vmem:[%s0] sm:$0xff]
  %v23 = vld [vmem:[%s1] sm:$0xff]
  %v24 = vld [vmem:[%s1 + $0x8] sm:$0xff]
  %v25 = vld [vmem:[%s1 + $0x10] sm:$0xff]
  %v26 = vld [vmem:[%s1 + $0x18] sm:$0xff]
  %v27 = vld [vmem:[%s1 + $0x20] sm:$0xff]
  %v28 = vld [vmem:[%s1 + $0x28] sm:$0xff]
  %v29 = vld [vmem:[%s1 + $0x30] sm:$0xff]
  %v30 = vld [vmem:[%s1 + $0x38] sm:$0xff]
  %v31 = vld [vmem:[%s1 + $0x40] sm:$0xff]
  %v32 = vld [vmem:[%s1 + $0x48] sm:$0xff]
  %v33 = vld [vmem:[%s1 + $0x50] sm:$0xff]
  %v34 = vld [vmem:[%s1 + $0x58] sm:$0xff]
  %v35 = vld [vmem:[%s1 + $0x60] sm:$0xff]
  %v36 = vld [vmem:[%s1 + $0x68] sm:$0xff]
  %v37 = vld [vmem:[%s1 + $0x70] sm:$0xff]
  %v38 = vld [vmem:[%s1 + $0x78] sm:$0xff]
  %vm39 = vcmask 261120
  %v41 = vsel %vm39, %v22, 0
  %v44 = vsel %vm39, %v23, 0
  %v47 = vsel %vm39, %v24, 0
  %v50 = vsel %vm39, %v25, 0
  %v53 = vsel %vm39, %v26, 0
  %v56 = vsel %vm39, %v27, 0
  %v59 = vsel %vm39, %v28, 0
  %v62 = vsel %vm39, %v29, 0
  %v65 = vsel %vm39, %v30, 0
  %v68 = vsel %vm39, %v31, 0
  %v71 = vsel %vm39, %v32, 0
  %v74 = vsel %vm39, %v33, 0
  %v77 = vsel %vm39, %v34, 0
  %v80 = vsel %vm39, %v35, 0
  %v83 = vsel %vm39, %v36, 0
  %v86 = vsel %vm39, %v37, 0
  %v89 = vsel %vm39, %v38, 0
  %91 = vmatpush.xpose.msra.mxu0 %v89
  %92 = vmatpush.xpose.msra.mxu0 %v86
  %93 = vmatpush.xpose.msra.mxu0 %v83
  %94 = vmatpush.xpose.msra.mxu0 %v80
  %95 = vmatpush.xpose.msra.mxu0 %v77
  %96 = vmatpush.xpose.msra.mxu0 %v74
  %97 = vmatpush.xpose.msra.mxu0 %v71
  %98 = vmatpush.xpose.msra.mxu0 %v68
  %99 = vmatpush.xpose.msra.mxu0 %v65
  %100 = vmatpush.xpose.msra.mxu0 %v62
  %101 = vmatpush.xpose.msra.mxu0 %v59
  %102 = vmatpush.xpose.msra.mxu0 %v56
  %103 = vmatpush.xpose.msra.mxu0 %v53
  %104 = vmatpush.xpose.msra.mxu0 %v50
  %105 = vmatpush.xpose.msra.mxu0 %v47
  %106 = vmatpush.xpose.msra.mxu0 %v44
  %107 = vmatmul.f32.gmra.mxu0 %v41
  %v108 = vpop.f32.mrf.mxu0
  %v109 = vadd.f32 0.0, %v108
  %110 = vdwg.mxu0
  %v111 = vld [vmem:[%s2] sm:$0xff]
  %s112 = smul.u32 0, 128
  %v113 = vlaneseq
  %v114 = vand.u32 %v113, 127
  %v115 = vstv %s112
  %v116 = vsub.s32 %v111, %v115
  %117 = vset.pattern.permute.xlu0 0
  %118 = vperm.xlu0 %117, %v116
  %v119 = vpop.permute.xlu0 %118
  %vm120 = vcmp.eq.s32.totalorder %v114, %v119
  %v121 = vld [vmem:[#allocation2] sm:$0xff]
  %v122 = vsel %vm120, %v109, 0.0
  %123 = vadd.xlane.f32.xlu0 %v122
  %v124 = vpop.xlane.xlu0 %123
  %v125 = vadd.f32 %v121, %v124
  %vm126 = vcmask 7168
  %127 = vst.msk [vmem:[#allocation2] sm:$0xff] %vm126, %v125
  %s128 = ssub.s32 16, %s112
  %v129 = vstv %s128
  %vm130 = vcmp.ge.s32.totalorder %v114, %v129
  %vm131 = vmor %vm120, %vm130
  %v132 = vmul.f32 %v109, 10.0
  %v133 = vsel %vm131, -1e+30, %v132
  %v134 = vld [vmem:[#allocation3] sm:$0xff]
  %135 = vmax.xlane.f32.xlu0 %v133
  %v136 = vpop.xlane.xlu0 %135
  %v137 = vmax.f32 %v134, %v136
  %v138 = vld [vmem:[#allocation4] sm:$0xff]
  %v139 = vsub.f32 %v134, %v137
  %v140 = vmul.f32 %v139, 1.442695
  %v141 = vpow.pop %v140
  %v142 = vmul.f32 %v138, %v141
  %144 = vset.pattern.permute.xlu0 0
  %145 = vperm.xlu0 %144, %v137
  %v146 = vpop.permute.xlu0 %145
  %v148 = vsub.f32 %v133, %v146
  %v149 = vmul.f32 %v148, 1.442695
  %v150 = vpow.pop %v149
  %151 = vadd.xlane.f32.xlu0 %v150
  %v152 = vpop.xlane.xlu0 %151
  %v153 = vadd.f32 %v142, %v152
  %154 = vst.msk [vmem:[#allocation4] sm:$0xff] %vm126, %v153
  %155 = vst.msk [vmem:[#allocation3] sm:$0xff] %vm126, %v137
  // Predicated region
  $region18: #{tpu_custom_call.1} parent=0 // pred_check
    %p156 = pneg %p14
  $region19: #{tpu_custom_call.1} parent=0 // pred_check_branch
    %158 = sbr.rel (%p156) target = $region21
  $region20: #{tpu_custom_call.1} parent=0 // pred_region
    %v159 = vld [vmem:[#allocation2] sm:$0xff]
    %v160 = vsub.f32 %v159, 0.4
    %v161 = vmul.f32 %v160, 10.0
    %v162 = vld [vmem:[#allocation3] sm:$0xff]
    %v163 = vld [vmem:[#allocation4] sm:$0xff]
    %v164 = vmax.f32 %v161, %v162
    %v165 = vsub.f32 %v161, %v164
    %v166 = vmul.f32 %v165, 1.442695
    %v167 = vpow.pop %v166
    %v168 = vsub.f32 %v162, %v164
    %v169 = vmul.f32 %v168, 1.442695
    %v170 = vpow.pop %v169
    %v171 = vmul.f32 %v163, %v170
    %v172 = vadd.f32 %v167, %v171
    %v173 = vlog2.pop %v172
    %v174 = vmul.f32 %v173, 0.6931472
    %v175 = vadd.f32 %v164, %v174
    %v176 = vsub.f32 %v161, %v175
    %177 = vst.msk [vmem:[%s3] sm:$0xff] %vm126, %v176
  $region21: #{tpu_custom_call.1} parent=0 // pred_fallthru
    _
  // Predicated region
  $region22: #{tpu_custom_call.1} parent=0 // pred_check
    _
  $region23: #{tpu_custom_call.1} parent=0 // pred_check_branch
    %179 = sbr.rel (0) target = $region25
  $region24: #{tpu_custom_call.1} parent=0 // pred_region
    _
  $region25: #{tpu_custom_call.1} parent=0 // pred_fallthru
    _
  // Predicated region
  $region26: #{tpu_custom_call.1} parent=0 // pred_check
    _
  $region27: #{tpu_custom_call.1} parent=0 // pred_check_branch
    %181 = sbr.rel (0) target = $region29
  $region28: #{tpu_custom_call.1} parent=0 // pred_region
    _
  $region29: #{tpu_custom_call.1} parent=0 // pred_fallthru
    _

</llo_original>
